<compile_context>
chip_gen: v7x
topology: tpu7x:2x2x1
jax: 0.10.0
libtpu: 0.0.40
codegen_flags: <defaults>
</compile_context>

<pallas_src>
import functools

import jax
import jax.numpy as jnp
from jax import lax
from jax.experimental import pallas as pl
from jax.experimental.pallas import tpu as pltpu


def _round_up(x, m):
    return (x + m - 1) // m * m


def _coam_kernel(gamma_ref, x1_ref, x2_ref, out_ref, *scratch,
                 n_valid, n_pad, tc, cast_value):
    ct = pl.program_id(1)
    row0 = pl.multiple_of(ct * tc, tc)

    # Resident query block and this grid step's query row-tile (sliced from the
    # same resident block -- no second HBM stream for x1).
    q_full = x1_ref[0]                                    # (C_pad, N_pad) native
    q_tile = x1_ref[0, pl.ds(row0, tc), :]                # (TC,   N_pad) native

    # energy tile = q_tile @ q_full^T as an NT contraction (no XLU transpose),
    # f32 MXU accumulation.
    energy = lax.dot_general(
        q_tile, q_full,
        dimension_numbers=(((1,), (1,)), ((), ())),
        preferred_element_type=jnp.float32)               # (TC, C_pad) f32

    # attention = rowmax(energy) - energy
    att = jnp.max(energy, axis=-1, keepdims=True) - energy

    # Value operand: f32 inputs are used as-is; narrower dtypes are upcast once
    # per batch element into a persistent VMEM scratch (ct axis is serial).
    if cast_value:
        v32_ref = scratch[0]

        @pl.when(ct == 0)
        def _():
            v32_ref[...] = x2_ref[0].astype(jnp.float32)

        v_full = v32_ref[...]
        v_tile = v32_ref[pl.ds(row0, tc), :]
    else:
        v_full = x2_ref[0]
        v_tile = x2_ref[0, pl.ds(row0, tc), :]

    # out tile = attention @ value (f32 accumulate).
    o = jnp.dot(att, v_full, preferred_element_type=jnp.float32)  # (TC, N_pad)

    # Softmax over the spatial (lane) dim.  Padded lanes of `o` are exactly
    # zero (padded value columns are zero), so instead of a (TC, N_pad) iota
    # mask we subtract their exact contribution (n_pad - n_valid) * exp(-m)
    # from the denominator.  Taking the row max over the zero-padded row only
    # raises the shift, which is numerically safe for softmax.
    m = jnp.max(o, axis=-1, keepdims=True)
    e = jnp.exp(o - m)
    s = jnp.sum(e, axis=-1, keepdims=True)
    if n_pad != n_valid:
        s = s - jnp.float32(n_pad - n_valid) * jnp.exp(-m)
    sm = e * pl.reciprocal(s, approx=False)               # EUP recip + VPU mul

    gamma = gamma_ref[0]
    out_ref[0] = (sm + gamma * v_tile).astype(out_ref.dtype)


def _plan(C, N, itemsize, needs_cast):
    """Choose channel tile, padding, resident-block buffering and VMEM limit."""
    sub = max(8, 32 // itemsize)          # sublane multiple: 8 f32 / 16 bf16 / 32 i8
    n_pad = _round_up(N, 128)             # lane-dense spatial dim

    try:
        cap = int(pltpu.get_tpu_info().vmem_capacity_bytes)
    except Exception:
        cap = 64 * 2**20                  # conservative (v7x per-core) fallback
    budget = int(0.80 * cap)

    def shapes(tc_max):
        tc = _round_up(min(C, tc_max), sub)
        c_pad = tc if C <= tc else _round_up(C, tc)
        return tc, c_pad

    def footprint(tc, c_pad, bufs):
        full_block = c_pad * n_pad * itemsize          # resident x1 / x2 block
        out_tile = tc * n_pad * itemsize               # output tile
        blocks = 2 * bufs * full_block + 2 * out_tile  # pipelined buffers
        temps = 4 * (2 * tc * c_pad + 3 * tc * n_pad)  # f32 energy/att + o/e/sm
        scratch = 4 * c_pad * n_pad if needs_cast else 0
        return blocks + temps + scratch

    chosen = None
    for tc_max in (256, 128):             # bigger tile fills the 256x256 MXU (v6e/v7x)
        tc, c_pad = shapes(tc_max)
        for bufs in (2, 1):               # prefer double-buffered residents; fall
            if footprint(tc, c_pad, bufs) <= budget:   # back to single-buffer (v7x)
                chosen = (tc, c_pad, bufs)
                break
        if chosen is not None:
            break
    if chosen is None:                    # nothing fits cleanly: smallest config
        tc, c_pad = shapes(128)
        chosen = (tc, c_pad, 1)

    tc, c_pad, bufs = chosen
    fp = footprint(tc, c_pad, bufs)
    vmem_limit = int(min(budget, max(32 * 2**20, int(1.3 * fp))))
    return tc, c_pad, n_pad, bufs, vmem_limit


def coam_forward(x1, x2, gamma):
    """x1, x2: (B, C, H, W); gamma: (1,) float32 scalar parameter."""
    assert x1.shape == x2.shape
    B, C, H, W = x1.shape
    N = H * W
    itemsize = jnp.dtype(x1.dtype).itemsize
    cast_value = x1.dtype != jnp.float32

    tc, c_pad, n_pad, bufs, vmem_limit = _plan(C, N, itemsize, cast_value)

    x1f = x1.reshape(B, C, N)
    x2f = x2.reshape(B, C, N)
    if (c_pad, n_pad) != (C, N):
        # Zero padding is inert: padded query channels are zero rows (row max of
        # energy is >= the non-negative diagonal, so unchanged for valid rows),
        # padded value rows/columns are zero, padded softmax lanes are removed
        # from the denominator in-kernel, and padded output rows/cols are
        # sliced away below.
        pad = ((0, 0), (0, c_pad - C), (0, n_pad - N))
        x1f = jnp.pad(x1f, pad)
        x2f = jnp.pad(x2f, pad)

    def full_spec():
        # Resident full block: block index only depends on the batch index.
        if bufs == 1:
            return pl.BlockSpec((1, c_pad, n_pad), lambda b, ct: (b, 0, 0),
                                pipeline_mode=pl.Buffered(1))
        return pl.BlockSpec((1, c_pad, n_pad), lambda b, ct: (b, 0, 0))

    scratch_shapes = ([pltpu.VMEM((c_pad, n_pad), jnp.float32)]
                      if cast_value else [])

    if cast_value:
        # ct must be serial per core so the pl.when(ct == 0) scratch init runs.
        semantics = ("parallel", "arbitrary")
    else:
        # Prefer the batch split on megacore when B >= 2 (keeps resident blocks
        # fetched once per batch per core); allow ct split only when B == 1.
        semantics = ("parallel", "arbitrary") if B > 1 else ("parallel", "parallel")

    kernel = functools.partial(_coam_kernel, n_valid=N, n_pad=n_pad, tc=tc,
                               cast_value=cast_value)

    out_flat = pl.pallas_call(
        kernel,
        out_shape=jax.ShapeDtypeStruct((B, c_pad, n_pad), x2.dtype),
        grid=(B, c_pad // tc),
        in_specs=[
            pl.BlockSpec(memory_space=pltpu.SMEM),   # gamma (1,)
            full_spec(),                             # x1 full (resident)
            full_spec(),                             # x2 full (resident)
        ],
        out_specs=pl.BlockSpec((1, tc, n_pad), lambda b, ct: (b, ct, 0)),
        scratch_shapes=scratch_shapes,
        compiler_params=pltpu.CompilerParams(
            dimension_semantics=semantics,
            vmem_limit_bytes=vmem_limit),
    )(gamma, x1f, x2f)

    return out_flat[:, :C, :N].reshape(B, C, H, W)


def coam_reference(x1, x2, gamma):
    """Plain-JAX reference mirroring the PyTorch module exactly."""
    B, C, H, W = x1.shape
    N = H * W
    q = x1.reshape(B, C, N).astype(jnp.float32)
    k = jnp.swapaxes(q, 1, 2)
    energy = jnp.einsum("bcn,bnd->bcd", q, k)
    att = jnp.max(energy, axis=-1, keepdims=True) - energy
    v = x2.reshape(B, C, N).astype(jnp.float32)
    out = jnp.einsum("bcd,bdn->bcn", att, v)
    out = jax.nn.softmax(out, axis=-1)
    out = out.reshape(B, C, H, W)
    return out + gamma[0] * x2.astype(jnp.float32)


if __name__ == "__main__":
    key = jax.random.PRNGKey(0)
    k1, k2, k3, k4, k5, k6 = jax.random.split(key, 6)

    # Case 1: module-default gamma (zeros), already lane-dense shapes.
    B, C, H, W = 2, 8, 16, 16
    x1 = jax.random.normal(k1, (B, C, H, W), dtype=jnp.float32)
    x2 = jax.random.normal(k2, (B, C, H, W), dtype=jnp.float32)
    gamma = jnp.zeros((1,), dtype=jnp.float32)   # nn.Parameter(torch.zeros(1))
    out = jax.block_until_ready(coam_forward(x1, x2, gamma))
    ref = coam_reference(x1, x2, gamma)
    assert out.shape == (B, C, H, W)
    assert jnp.allclose(out, ref, atol=1e-5, rtol=1e-5), "case1 mismatch vs reference"

    # Case 2: non-lane-dense spatial size and non-multiple-of-8 channels
    # (exercises padding + scalar softmax-denominator correction), gamma != 0.
    B2, C2, H2, W2 = 2, 5, 10, 10
    y1 = jax.random.normal(k3, (B2, C2, H2, W2), dtype=jnp.float32)
    y2 = jax.random.normal(k4, (B2, C2, H2, W2), dtype=jnp.float32)
    gamma2 = jnp.full((1,), 0.5, dtype=jnp.float32)
    out2 = jax.block_until_ready(coam_forward(y1, y2, gamma2))
    ref2 = coam_reference(y1, y2, gamma2)
    assert out2.shape == (B2, C2, H2, W2)
    assert jnp.allclose(out2, ref2, atol=1e-5, rtol=1e-5), "case2 mismatch vs reference"

    # Case 3: bfloat16 inputs (exercises the once-per-batch f32 value scratch,
    # dtype-aware sublane tiling and native-dtype MXU operands).
    B3, C3, H3, W3 = 2, 6, 10, 10
    z1 = jax.random.normal(k5, (B3, C3, H3, W3), dtype=jnp.float32).astype(jnp.bfloat16)
    z2 = jax.random.normal(k6, (B3, C3, H3, W3), dtype=jnp.float32).astype(jnp.bfloat16)
    gamma3 = jnp.full((1,), 0.25, dtype=jnp.float32)
    out3 = jax.block_until_ready(coam_forward(z1, z2, gamma3))
    ref3 = coam_reference(z1, z2, gamma3)
    assert out3.shape == (B3, C3, H3, W3)
    assert out3.dtype == jnp.bfloat16
    assert jnp.allclose(out3.astype(jnp.float32), ref3, atol=3e-2, rtol=3e-2), \
        "case3 (bf16) mismatch vs reference"

    print("KERNEL_OK")
</pallas_src>

<mosaic_0001>
module attributes {stable_mosaic.version = 11 : i64} {
  func.func @_coam_kernel(%arg0: i32, %arg1: i32, %arg2: memref<1xf32, #tpu.memory_space<smem>>, %arg3: memref<1x8x256xf32, #tpu.memory_space<vmem>>, %arg4: memref<1x8x256xf32, #tpu.memory_space<vmem>>, %arg5: memref<1x8x256xf32, #tpu.memory_space<vmem>>) attributes {dimension_semantics = [#tpu.dimension_semantics<parallel>, #tpu.dimension_semantics<arbitrary>], iteration_bounds = array<i64: 2, 1>, scalar_prefetch = 0 : i64, scratch_operands = 0 : i64, tpu.core_type = #tpu.core_type<tc>, window_params = [{transform_indices = @transform_0, window_bounds = array<i64: 1>}, {transform_indices = @transform_1, window_bounds = array<i64: 1, 8, 256>}, {transform_indices = @transform_2, window_bounds = array<i64: 1, 8, 256>}, {transform_indices = @transform_3, window_bounds = array<i64: 1, 8, 256>}]} {
    %c8_i32 = arith.constant 8 : i32
    %0 = arith.muli %arg1, %c8_i32 : i32
    %1 = tpu.assume_multiple %0, 8 : i32
    %c0 = arith.constant 0 : index
    %c0_0 = arith.constant 0 : index
    %c0_1 = arith.constant 0 : index
    %2 = vector.load %arg3[%c0, %c0_0, %c0_1] : memref<1x8x256xf32, #tpu.memory_space<vmem>>, vector<1x8x256xf32>
    %3 = vector.shape_cast %2 : vector<1x8x256xf32> to vector<8x256xf32>
    %c0_2 = arith.constant 0 : index
    %4 = arith.index_cast %1 : i32 to index
    %c0_3 = arith.constant 0 : index
    %5 = vector.load %arg3[%c0_2, %4, %c0_3] : memref<1x8x256xf32, #tpu.memory_space<vmem>>, vector<1x8x256xf32>
    %6 = vector.shape_cast %5 : vector<1x8x256xf32> to vector<8x256xf32>
    %cst = arith.constant dense<0.000000e+00> : vector<8x8xf32>
    %7 = tpu.matmul %6, %3, %cst {dimension_numbers = #tpu.dot_dimension_numbers<[1], [1], [0], [0], [0, 0, 1, 0], [], []>} : vector<8x256xf32>, vector<8x256xf32>, vector<8x8xf32> -> vector<8x8xf32>
    %cst_4 = arith.constant dense<0xFF800000> : vector<8xf32>
    %8 = vector.multi_reduction <maximumf>, %7, %cst_4 [1] : vector<8x8xf32> to vector<8xf32>
    %9 = vector.shape_cast %8 : vector<8xf32> to vector<8x1xf32>
    %10 = vector.broadcast %9 : vector<8x1xf32> to vector<8x8xf32>
    %11 = arith.subf %10, %7 : vector<8x8xf32>
    %c0_5 = arith.constant 0 : index
    %c0_6 = arith.constant 0 : index
    %c0_7 = arith.constant 0 : index
    %12 = vector.load %arg4[%c0_5, %c0_6, %c0_7] : memref<1x8x256xf32, #tpu.memory_space<vmem>>, vector<1x8x256xf32>
    %13 = vector.shape_cast %12 : vector<1x8x256xf32> to vector<8x256xf32>
    %c0_8 = arith.constant 0 : index
    %14 = arith.index_cast %1 : i32 to index
    %c0_9 = arith.constant 0 : index
    %15 = vector.load %arg4[%c0_8, %14, %c0_9] : memref<1x8x256xf32, #tpu.memory_space<vmem>>, vector<1x8x256xf32>
    %16 = vector.shape_cast %15 : vector<1x8x256xf32> to vector<8x256xf32>
    %cst_10 = arith.constant dense<0.000000e+00> : vector<8x256xf32>
    %17 = tpu.matmul %11, %13, %cst_10 {dimension_numbers = #tpu.dot_dimension_numbers<[1], [0], [0], [1], [0, 0, 1, 1], [], []>} : vector<8x8xf32>, vector<8x256xf32>, vector<8x256xf32> -> vector<8x256xf32>
    %cst_11 = arith.constant dense<0xFF800000> : vector<8xf32>
    %18 = vector.multi_reduction <maximumf>, %17, %cst_11 [1] : vector<8x256xf32> to vector<8xf32>
    %19 = vector.shape_cast %18 : vector<8xf32> to vector<8x1xf32>
    %20 = vector.broadcast %19 : vector<8x1xf32> to vector<8x256xf32>
    %21 = arith.subf %17, %20 : vector<8x256xf32>
    %22 = math.exp %21 : vector<8x256xf32>
    %cst_12 = arith.constant dense<0.000000e+00> : vector<8xf32>
    %23 = vector.multi_reduction <add>, %22, %cst_12 [1] : vector<8x256xf32> to vector<8xf32>
    %24 = vector.shape_cast %23 : vector<8xf32> to vector<8x1xf32>
    %25 = tpu.reciprocal %24 : vector<8x1xf32> -> vector<8x1xf32>
    %26 = vector.broadcast %25 : vector<8x1xf32> to vector<8x256xf32>
    %27 = arith.mulf %22, %26 : vector<8x256xf32>
    %c0_13 = arith.constant 0 : index
    %28 = memref.load %arg2[%c0_13] : memref<1xf32, #tpu.memory_space<smem>>
    %29 = vector.broadcast %28 : f32 to vector<8x256xf32>
    %30 = arith.mulf %29, %16 : vector<8x256xf32>
    %31 = arith.addf %27, %30 : vector<8x256xf32>
    %c0_14 = arith.constant 0 : index
    %c0_15 = arith.constant 0 : index
    %c0_16 = arith.constant 0 : index
    %32 = vector.load %arg5[%c0_14, %c0_15, %c0_16] : memref<1x8x256xf32, #tpu.memory_space<vmem>>, vector<1x8x256xf32>
    %33 = vector.shape_cast %32 : vector<1x8x256xf32> to vector<8x256xf32>
    %34 = vector.shape_cast %31 : vector<8x256xf32> to vector<1x8x256xf32>
    tpu.vector_store %arg5[%c0_14, %c0_15, %c0_16], %34 {strides = array<i32>} : memref<1x8x256xf32, #tpu.memory_space<vmem>>, vector<1x8x256xf32>,
    return
  }
  func.func @transform_0(%arg0: i32, %arg1: i32) -> i32 {
    %c0_i32 = arith.constant 0 : i32
    %c0_i32_0 = arith.constant 0 : i32
    return %c0_i32 : i32
  }
  func.func @transform_1(%arg0: i32, %arg1: i32) -> (i32, i32, i32) {
    %c0_i32 = arith.constant 0 : i32
    %c0_i32_0 = arith.constant 0 : i32
    %c0_i32_1 = arith.constant 0 : i32
    return %arg0, %c0_i32, %c0_i32_0 : i32, i32, i32
  }
  func.func @transform_2(%arg0: i32, %arg1: i32) -> (i32, i32, i32) {
    %c0_i32 = arith.constant 0 : i32
    %c0_i32_0 = arith.constant 0 : i32
    %c0_i32_1 = arith.constant 0 : i32
    return %arg0, %c0_i32, %c0_i32_0 : i32, i32, i32
  }
  func.func @transform_3(%arg0: i32, %arg1: i32) -> (i32, i32, i32) {
    %c0_i32 = arith.constant 0 : i32
    %c0_i32_0 = arith.constant 0 : i32
    return %arg0, %arg1, %c0_i32 : i32, i32, i32
  }
}

</mosaic_0001>

<llo_original>
// kernel: tpu_custom_call.1
$region0: #{tpu_custom_call.1}
  #allocation0 [shape = 'u32[]', space=smem, size = 0x4, offset = 0x4, fixed_abs, tag = 'smem constant byte address 0x4 - core index']
  #allocation1 [shape = 'u32[144,128]{1,0:T(1,128)}', space=vmem, size = 0x12000, scoped, tag = 'internal scratch']
  #allocation2 [shape = 'f32[1]{0:T(128)S(6)}', space=smem, size = 0x200, scoped, tag = 'scoped memory for tpu_custom_call.1']
  %s0 = inlined_call_operand.<no memory space> [shape: f32[1], index: 0, kind: input, shape index: {}]
  %s1 = inlined_call_operand.hbm [shape: f32[2,8,256], index: 1, kind: input, shape index: {}]
  %s2 = inlined_call_operand.hbm [shape: f32[2,8,256], index: 2, kind: input, shape index: {}]
  %s3 = inlined_call_operand.hbm [shape: f32[2,8,256], index: 3, kind: output, shape index: {}]
  %s4 = sld [smem:[#allocation0]]
  $region53: #{tpu_custom_call.1} parent=0
    _
  %s6 = ssub.s32 1, %s4
  %s7 = scalar_select 0, %s6, %s4
  %8 = sst [smem:[#allocation2]] %s0
  $region1: #{tpu_custom_call.1} parent=0
    #allocation3 [shape = 'u8[16384]{0}', space=vmem, size = 0x4000, scoped, tag = 'input window, operand 1']
    #allocation4 [shape = 's32[2]{0}', space=sflag, size = 0x8, scoped, tag = 'scoped memory for tpu_custom_call.1']
    #allocation5 [shape = 's32[2]{0}', space=sflag, size = 0x8, scoped, tag = 'scoped memory for tpu_custom_call.1']
    #allocation6 [shape = 'u8[16384]{0}', space=vmem, size = 0x4000, scoped, tag = 'input window, operand 2']
    #allocation7 [shape = 's32[2]{0}', space=sflag, size = 0x8, scoped, tag = 'scoped memory for tpu_custom_call.1']
    #allocation8 [shape = 'u8[16384]{0}', space=vmem, size = 0x4000, scoped, tag = 'output window, operand 0']
    %9 = vsyncpa [#allocation4], 0
    %s10 = scalar_lea.sflag [#allocation4], 1
    %11 = vsyncpa %s10, 0
    %12 = vsyncpa [#allocation7], 0
    %s13 = scalar_lea.sflag [#allocation7], 1
    %14 = vsyncpa %s13, 0
    %15 = vsyncpa [#allocation5], 0
    %s16 = scalar_lea.sflag [#allocation5], 1
    %17 = vsyncpa %s16, 0
    loop: start=0, step=1, limit=4
    $region2: #{tpu_custom_call.1} parent=1 // loop_pre_header
      _
    $region3: #{tpu_custom_call.1} parent=1 // loop_header
      %s19 = sphi 0, %s23
      %p20 = scmp.ge.s32.totalorder %s19, 4
      %s26 = sphi 0, %s38
      %s27 = sphi 0, %s34
      %s28 = sphi 0, %s26
      %s29 = sphi 0, %s27
      %s30 = sphi 0, %s28
      %s31 = sphi 0, %s29
      %s39 = sphi 0, %s39
      %s41 = sphi 0, %s39
      %s42 = sphi 0, %s41
      %s56 = sphi 0, %s42
      %s62 = sphi 0, %s64
      %s65 = sphi 0, %s62
      %s66 = sphi 0, %s65
      %s82 = sphi 0, %s66
      %s88 = sphi 0, %s90
      %s91 = sphi 0, %s88
      %s92 = sphi 0, %s91
      %s108 = sphi 0, %s92
      %s116 = sphi 0, %s118
      %s119 = sphi 0, %s116
      %s120 = sphi 0, %s119
      %s136 = sphi 0, %s120
    $region4: #{tpu_custom_call.1} parent=1 // loop_header_branch
      %22 = sbr.rel (%p20) target = $region8
    $region5: #{tpu_custom_call.1} parent=1 // loop_body
      %s24 = ssub.s32 %s19, 1
      %s25 = ssub.s32 %s19, 2
      %s32 = sadd.s32 1, %s27
      %p33 = scmp.ge.s32.totalorder %s32, 1
      %s34 = scalar_select %p33, 0, %s32
      %s35 = sadd.s32 1, %s26
      %s36 = scalar_select %p33, %s35, %s26
      %p37 = scmp.ge.s32.totalorder %s36, 2
      %s38 = scalar_select %p37, 0, %s36
      %s40 = sadd.s32 %s39, 1
      %p43 = scmp.eq.s32.totalorder %s19, 1
      %p44 = scmp.ne.s32.totalorder %s39, %s41
      %p45 = scmp.eq.s32.totalorder %s19, 0
      %p46 = por %p44, %p45
      %p47 = scmp.ne.s32.totalorder %s39, %s41
      %p48 = scmp.eq.s32.totalorder %s24, 1
      %p49 = por %p47, %p48
      %p50 = scmp.ne.s32.totalorder %s41, %s42
      %p51 = scmp.eq.s32.totalorder %s24, 0
      %p52 = por %p50, %p51
      %p53 = scmp.ne.s32.totalorder %s41, %s42
      %p54 = scmp.eq.s32.totalorder %s25, 1
      %p55 = por %p53, %p54
      %p57 = scmp.ne.s32.totalorder %s42, %s56
      %p58 = scmp.eq.s32.totalorder %s25, 0
      %p59 = por %p57, %p58
      %s60 = ssub.s32 %s26, %s38
      %p61 = scmp.eq.s32.totalorder %s60, 0
      %s63 = sadd.s32 %s62, 1
      %s64 = scalar_select %p61, %s62, %s63
      %p67 = pneg %p61
      %p68 = scmp.eq.s32.totalorder %s19, 1
      %p69 = por %p67, %p68
      %p70 = scmp.ne.s32.totalorder %s62, %s65
      %p71 = scmp.eq.s32.totalorder %s19, 0
      %p72 = por %p70, %p71
      %p73 = scmp.ne.s32.totalorder %s62, %s65
      %p74 = scmp.eq.s32.totalorder %s24, 1
      %p75 = por %p73, %p74
      %p76 = scmp.ne.s32.totalorder %s65, %s66
      %p77 = scmp.eq.s32.totalorder %s24, 0
      %p78 = por %p76, %p77
      %p79 = scmp.ne.s32.totalorder %s65, %s66
      %p80 = scmp.eq.s32.totalorder %s25, 1
      %p81 = por %p79, %p80
      %p83 = scmp.ne.s32.totalorder %s66, %s82
      %p84 = scmp.eq.s32.totalorder %s25, 0
      %p85 = por %p83, %p84
      %s86 = ssub.s32 %s26, %s38
      %p87 = scmp.eq.s32.totalorder %s86, 0
      %s89 = sadd.s32 %s88, 1
      %s90 = scalar_select %p87, %s88, %s89
      %p93 = pneg %p87
      %p94 = scmp.eq.s32.totalorder %s19, 1
      %p95 = por %p93, %p94
      %p96 = scmp.ne.s32.totalorder %s88, %s91
      %p97 = scmp.eq.s32.totalorder %s19, 0
      %p98 = por %p96, %p97
      %p99 = scmp.ne.s32.totalorder %s88, %s91
      %p100 = scmp.eq.s32.totalorder %s24, 1
      %p101 = por %p99, %p100
      %p102 = scmp.ne.s32.totalorder %s91, %s92
      %p103 = scmp.eq.s32.totalorder %s24, 0
      %p104 = por %p102, %p103
      %p105 = scmp.ne.s32.totalorder %s91, %s92
      %p106 = scmp.eq.s32.totalorder %s25, 1
      %p107 = por %p105, %p106
      %p109 = scmp.ne.s32.totalorder %s92, %s108
      %p110 = scmp.eq.s32.totalorder %s25, 0
      %p111 = por %p109, %p110
      %s112 = ssub.s32 %s26, %s38
      %s113 = ssub.s32 %s27, %s34
      %s114 = sor.u32 %s112, %s113
      %p115 = scmp.eq.s32.totalorder %s114, 0
      %s117 = sadd.s32 %s116, 1
      %s118 = scalar_select %p115, %s116, %s117
      %p121 = pneg %p115
      %p122 = scmp.eq.s32.totalorder %s19, 1
      %p123 = por %p121, %p122
      %p124 = scmp.ne.s32.totalorder %s116, %s119
      %p125 = scmp.eq.s32.totalorder %s19, 0
      %p126 = por %p124, %p125
      %p127 = scmp.ne.s32.totalorder %s116, %s119
      %p128 = scmp.eq.s32.totalorder %s24, 1
      %p129 = por %p127, %p128
      %p130 = scmp.ne.s32.totalorder %s119, %s120
      %p131 = scmp.eq.s32.totalorder %s24, 0
      %p132 = por %p130, %p131
      %p133 = scmp.ne.s32.totalorder %s119, %s120
      %p134 = scmp.eq.s32.totalorder %s25, 1
      %p135 = por %p133, %p134
      %p137 = scmp.ne.s32.totalorder %s120, %s136
      %p138 = scmp.eq.s32.totalorder %s25, 0
      %p139 = por %p137, %p138
      %p140 = scmp.le.s32.totalorder 1, %s19
      %p141 = scmp.lt.s32.totalorder %s19, 3
      %p142 = pnand %p140, %p141
      %p143 = pneg %p142
      // Predicated region
      $region9: #{tpu_custom_call.1} parent=5 // pred_check
        _
      $region10: #{tpu_custom_call.1} parent=5 // pred_check_branch
        %145 = sbr.rel (%p142) target = $region12
      $region11: #{tpu_custom_call.1} parent=5 // pred_region
        %s146 = ssub.s32 %s19, 1
        // Predicated region
        $region13: #{tpu_custom_call.1} parent=11 // pred_check
          %p147 = pneg %p52
        $region14: #{tpu_custom_call.1} parent=11 // pred_check_branch
          %149 = sbr.rel (%p147) target = $region16
        $region15: #{tpu_custom_call.1} parent=11 // pred_region
          _
        $region16: #{tpu_custom_call.1} parent=11 // pred_fallthru
          _
      $region12: #{tpu_custom_call.1} parent=5 // pred_fallthru
        _
      %p150 = scmp.lt.s32.totalorder %s19, 2
      // Predicated region
      $region17: #{tpu_custom_call.1} parent=5 // pred_check
        %p151 = pneg %p150
      $region18: #{tpu_custom_call.1} parent=5 // pred_check_branch
        %153 = sbr.rel (%p151) target = $region20
      $region19: #{tpu_custom_call.1} parent=5 // pred_region
        // Predicated region
        $region21: #{tpu_custom_call.1} parent=19 // pred_check
          %p154 = pneg %p72
        $region22: #{tpu_custom_call.1} parent=19 // pred_check_branch
          %156 = sbr.rel (%p154) target = $region24
        $region23: #{tpu_custom_call.1} parent=19 // pred_region
          %s157 = sand.u32 %s62, 1
          %s158 = scalar_lea.sflag [#allocation4], %s157
          %s159 = sand.u32 %s62, 1
          %s160 = smul.addr %s159, 16
          %s161 = scalar_lea.vmem [#allocation3], %s160
          %s163 = ssub.s32 256, 256
          %164 = vsyncadd %s158, %s163
          %s165 = smul.addr %s26, 2
          %s166 = smul.addr %s165, 128
          %s167 = scalar_lea.hbm %s1, %s166
          %s169 = sshll.u32 %s161, 4
          %s170 = int_to_ptr.vmem [resolvable:$true] %s169
          %172 = dma.hbm_to_vmem [thread:$0]  %s167, 256, %s170, %s158
        $region24: #{tpu_custom_call.1} parent=19 // pred_fallthru
          _
        // Predicated region
        $region25: #{tpu_custom_call.1} parent=19 // pred_check
          %p173 = pneg %p98
        $region26: #{tpu_custom_call.1} parent=19 // pred_check_branch
          %175 = sbr.rel (%p173) target = $region28
        $region27: #{tpu_custom_call.1} parent=19 // pred_region
          %s176 = sand.u32 %s88, 1
          %s177 = scalar_lea.sflag [#allocation7], %s176
          %s178 = sand.u32 %s88, 1
          %s179 = smul.addr %s178, 16
          %s180 = scalar_lea.vmem [#allocation6], %s179
          %s182 = ssub.s32 256, 256
          %183 = vsyncadd %s177, %s182
          %s184 = smul.addr %s26, 2
          %s185 = smul.addr %s184, 128
          %s186 = scalar_lea.hbm %s2, %s185
          %s188 = sshll.u32 %s180, 4
          %s189 = int_to_ptr.vmem [resolvable:$true] %s188
          %191 = dma.hbm_to_vmem [thread:$0]  %s186, 256, %s189, %s177
        $region28: #{tpu_custom_call.1} parent=19 // pred_fallthru
          _
      $region20: #{tpu_custom_call.1} parent=5 // pred_fallthru
        _
      %p192 = scmp.le.s32.totalorder 1, %s19
      %p193 = scmp.lt.s32.totalorder %s19, 3
      %p194 = pnand %p192, %p193
      %p195 = pneg %p194
      // Predicated region
      $region29: #{tpu_custom_call.1} parent=5 // pred_check
        _
      $region30: #{tpu_custom_call.1} parent=5 // pred_check_branch
        %197 = sbr.rel (%p194) target = $region32
      $region31: #{tpu_custom_call.1} parent=5 // pred_region
        %s198 = ssub.s32 %s19, 1
        %s199 = sand.u32 %s65, 1
        %s200 = scalar_lea.sflag [#allocation4], %s199
        %s201 = sand.u32 %s65, 1
        %s202 = smul.addr %s201, 16
        %s203 = scalar_lea.vmem [#allocation3], %s202
        // Predicated region
        $region33: #{tpu_custom_call.1} parent=31 // pred_check
          %p204 = pneg %p78
        $region34: #{tpu_custom_call.1} parent=31 // pred_check_branch
          %206 = sbr.rel (%p204) target = $region36
        $region35: #{tpu_custom_call.1} parent=31 // pred_region
          %207 = dma.done %s200, 256
        $region36: #{tpu_custom_call.1} parent=31 // pred_fallthru
          _
        %s208 = sand.u32 %s91, 1
        %s209 = scalar_lea.sflag [#allocation7], %s208
        %s210 = sand.u32 %s91, 1
        %s211 = smul.addr %s210, 16
        %s212 = scalar_lea.vmem [#allocation6], %s211
        // Predicated region
        $region37: #{tpu_custom_call.1} parent=31 // pred_check
          %p213 = pneg %p104
        $region38: #{tpu_custom_call.1} parent=31 // pred_check_branch
          %215 = sbr.rel (%p213) target = $region40
        $region39: #{tpu_custom_call.1} parent=31 // pred_region
          %216 = dma.done %s209, 256
        $region40: #{tpu_custom_call.1} parent=31 // pred_fallthru
          _
        %p217 = pneg %p52
        %p218 = pneg %p49
        %s219 = sand.u32 %s65, 1
        %s220 = scalar_lea.sflag [#allocation4], %s219
        %s221 = sand.u32 %s65, 1
        %s222 = smul.addr %s221, 16
        %s223 = scalar_lea.vmem [#allocation3], %s222
        %p224 = pneg %p78
        %p225 = pneg %p75
        %s226 = sand.u32 %s91, 1
        %s227 = scalar_lea.sflag [#allocation7], %s226
        %s228 = sand.u32 %s91, 1
        %s229 = smul.addr %s228, 16
        %s230 = scalar_lea.vmem [#allocation6], %s229
        %p231 = pneg %p104
        %p232 = pneg %p101
        %p233 = pneg %p132
        %p234 = pneg %p129
        %s235 = sand.u32 %s119, 1
        %s236 = scalar_lea.sflag [#allocation5], %s235
        %s237 = sand.u32 %s119, 1
        %s238 = smul.addr %s237, 16
        %s239 = scalar_lea.vmem [#allocation8], %s238
        %s240 = smul.u32 %s29, 8
        %v241 = vld [vmem:[%s203] sm:$0xff]
        %v242 = vld [vmem:[%s203 + $0x8] sm:$0xff]
        %s243 = sshra.s32 %s240, 3
        %s244 = sand.u32 %s240, 7
        %s245 = smul.u32 %s243, 2
        %s246 = smul.addr %s245, 8
        %s247 = scalar_lea.vmem %s203, %s246 [#allocation3]
        %v248 = vld [vmem:[%s247] sm:$0xff]
        %v249 = vld [vmem:[%s247 + $0x8] sm:$0xff]
        %250 = vmatprep.subr.mxu0 %v242
        %251 = vmatpush1.xpose.msra.mxu0 %v241
        %252 = vmatprep.subr.mxu0 0.0
        %253 = vmatpush1.xpose.msra.mxu0 0.0
        %254 = vmatprep.subr.mxu0 0.0
        %255 = vmatpush1.xpose.msra.mxu0 0.0
        %256 = vmatprep.subr.mxu0 0.0
        %257 = vmatpush1.xpose.msra.mxu0 0.0
        %258 = vmatprep.subr.mxu0 0.0
        %259 = vmatpush1.xpose.msra.mxu0 0.0
        %260 = vmatprep.subr.mxu0 0.0
        %261 = vmatpush1.xpose.msra.mxu0 0.0
        %262 = vmatprep.subr.mxu0 0.0
        %263 = vmatpush1.xpose.msra.mxu0 0.0
        %264 = vmatprep.subr.mxu0 0.0
        %265 = vmatpush1.xpose.msra.mxu0 0.0
        %266 = vmatprep.subr.mxu0 0.0
        %267 = vmatpush1.xpose.msra.mxu0 0.0
        %268 = vmatprep.subr.mxu0 0.0
        %269 = vmatpush1.xpose.msra.mxu0 0.0
        %270 = vmatprep.subr.mxu0 0.0
        %271 = vmatpush1.xpose.msra.mxu0 0.0
        %272 = vmatprep.subr.mxu0 0.0
        %273 = vmatpush1.xpose.msra.mxu0 0.0
        %274 = vmatprep.subr.mxu0 0.0
        %275 = vmatpush1.xpose.msra.mxu0 0.0
        %276 = vmatprep.subr.mxu0 0.0
        %277 = vmatpush1.xpose.msra.mxu0 0.0
        %278 = vmatprep.subr.mxu0 0.0
        %279 = vmatpush1.xpose.msra.mxu0 0.0
        %280 = vmatprep.subr.mxu0 0.0
        %281 = vmatpush1.xpose.msra.mxu0 0.0
        %282 = vmatprep.subr.mxu0 0.0
        %283 = vmatpush1.xpose.msra.mxu0 0.0
        %284 = vmatprep.subr.mxu0 0.0
        %285 = vmatpush1.xpose.msra.mxu0 0.0
        %286 = vmatprep.subr.mxu0 0.0
        %287 = vmatpush1.xpose.msra.mxu0 0.0
        %288 = vmatprep.subr.mxu0 0.0
        %289 = vmatpush1.xpose.msra.mxu0 0.0
        %290 = vmatprep.subr.mxu0 0.0
        %291 = vmatpush1.xpose.msra.mxu0 0.0
        %292 = vmatprep.subr.mxu0 0.0
        %293 = vmatpush1.xpose.msra.mxu0 0.0
        %294 = vmatprep.subr.mxu0 0.0
        %295 = vmatpush1.xpose.msra.mxu0 0.0
        %296 = vmatprep.subr.mxu0 0.0
        %297 = vmatpush1.xpose.msra.mxu0 0.0
        %298 = vmatprep.subr.mxu0 0.0
        %299 = vmatpush1.xpose.msra.mxu0 0.0
        %300 = vmatprep.subr.mxu0 0.0
        %301 = vmatpush1.xpose.msra.mxu0 0.0
        %302 = vmatprep.subr.mxu0 0.0
        %303 = vmatpush1.xpose.msra.mxu0 0.0
        %304 = vmatprep.subr.mxu0 0.0
        %305 = vmatpush1.xpose.msra.mxu0 0.0
        %306 = vmatprep.subr.mxu0 0.0
        %307 = vmatpush1.xpose.msra.mxu0 0.0
        %308 = vmatprep.subr.mxu0 0.0
        %309 = vmatpush1.xpose.msra.mxu0 0.0
        %310 = vmatprep.subr.mxu0 0.0
        %311 = vmatpush1.xpose.msra.mxu0 0.0
        %312 = vmatprep.subr.mxu0 0.0
        %313 = vmatpush1.xpose.msra.mxu0 0.0
        %314 = vmatprep.mubr.f32.mxu0 %v249
        %315 = vmatmul.mubr.f32.gmra.mrb[0].mxu0 %v248
        %v316 = vpop.f32.mrb[0].mxu0
        %v317 = vadd.f32 0.0, %v316
        %v318 = vpop.f32.mrb[0].mxu0
        %319 = vdwg.mxu0
        %vm320 = vcmask 64512
        %v321 = vsel %vm320, %v317, -inf
        %322 = vmax.xlane.f32.xlu0 %v321
        %v323 = vpop.xlane.xlu0 %322
        %v324 = vsub.f32 %v323, %v317
        %v325 = vld [vmem:[%s212] sm:$0xff]
        %v326 = vld [vmem:[%s212 + $0x8] sm:$0xff]
        %s327 = smul.addr %s245, 8
        %s328 = scalar_lea.vmem %s212, %s327 [#allocation6]
        %v329 = vld [vmem:[%s328] sm:$0xff]
        %v330 = vld [vmem:[%s328 + $0x8] sm:$0xff]
        %v332 = vsel %vm320, %v324, 0
        %334 = vmatprep.subr.mxu0 %v326
        %335 = vmatpush1.msra.mxu0 %v325
        %336 = vmatprep.subr.mxu0 0.0
        %337 = vmatpush1.msra.mxu0 0.0
        %338 = vmatprep.subr.mxu0 0.0
        %339 = vmatpush1.msra.mxu0 0.0
        %340 = vmatprep.subr.mxu0 0.0
        %341 = vmatpush1.msra.mxu0 0.0
        %342 = vmatprep.subr.mxu0 0.0
        %343 = vmatpush1.msra.mxu0 0.0
        %344 = vmatprep.subr.mxu0 0.0
        %345 = vmatpush1.msra.mxu0 0.0
        %346 = vmatprep.subr.mxu0 0.0
        %347 = vmatpush1.msra.mxu0 0.0
        %348 = vmatprep.subr.mxu0 0.0
        %349 = vmatpush1.msra.mxu0 0.0
        %350 = vmatprep.subr.mxu0 0.0
        %351 = vmatpush1.msra.mxu0 0.0
        %352 = vmatprep.subr.mxu0 0.0
        %353 = vmatpush1.msra.mxu0 0.0
        %354 = vmatprep.subr.mxu0 0.0
        %355 = vmatpush1.msra.mxu0 0.0
        %356 = vmatprep.subr.mxu0 0.0
        %357 = vmatpush1.msra.mxu0 0.0
        %358 = vmatprep.subr.mxu0 0.0
        %359 = vmatpush1.msra.mxu0 0.0
        %360 = vmatprep.subr.mxu0 0.0
        %361 = vmatpush1.msra.mxu0 0.0
        %362 = vmatprep.subr.mxu0 0.0
        %363 = vmatpush1.msra.mxu0 0.0
        %364 = vmatprep.subr.mxu0 0.0
        %365 = vmatpush1.msra.mxu0 0.0
        %366 = vmatprep.subr.mxu0 0.0
        %367 = vmatpush1.msra.mxu0 0.0
        %368 = vmatprep.subr.mxu0 0.0
        %369 = vmatpush1.msra.mxu0 0.0
        %370 = vmatprep.subr.mxu0 0.0
        %371 = vmatpush1.msra.mxu0 0.0
        %372 = vmatprep.subr.mxu0 0.0
        %373 = vmatpush1.msra.mxu0 0.0
        %374 = vmatprep.subr.mxu0 0.0
        %375 = vmatpush1.msra.mxu0 0.0
        %376 = vmatprep.subr.mxu0 0.0
        %377 = vmatpush1.msra.mxu0 0.0
        %378 = vmatprep.subr.mxu0 0.0
        %379 = vmatpush1.msra.mxu0 0.0
        %380 = vmatprep.subr.mxu0 0.0
        %381 = vmatpush1.msra.mxu0 0.0
        %382 = vmatprep.subr.mxu0 0.0
        %383 = vmatpush1.msra.mxu0 0.0
        %384 = vmatprep.subr.mxu0 0.0
        %385 = vmatpush1.msra.mxu0 0.0
        %386 = vmatprep.subr.mxu0 0.0
        %387 = vmatpush1.msra.mxu0 0.0
        %388 = vmatprep.subr.mxu0 0.0
        %389 = vmatpush1.msra.mxu0 0.0
        %390 = vmatprep.subr.mxu0 0.0
        %391 = vmatpush1.msra.mxu0 0.0
        %392 = vmatprep.subr.mxu0 0.0
        %393 = vmatpush1.msra.mxu0 0.0
        %394 = vmatprep.subr.mxu0 0.0
        %395 = vmatpush1.msra.mxu0 0.0
        %396 = vmatprep.subr.mxu0 0.0
        %397 = vmatpush1.msra.mxu0 0.0
        %398 = vmatprep.mubr.f32.mxu0 0.0
        %399 = vmatmul.mubr.f32.gmra.mrb[0].mxu0 %v332
        %v400 = vpop.f32.mrb[0].mxu0
        %v401 = vadd.f32 0.0, %v400
        %v402 = vpop.f32.mrb[0].mxu0
        %v403 = vadd.f32 0.0, %v402
        %404 = vdwg.mxu0
        %v405 = vmax.f32 %v401, %v403
        %406 = vmax.xlane.f32.xlu0 %v405
        %v407 = vpop.xlane.xlu0 %406
        %v408 = vsub.f32 %v401, %v407
        %v409 = vsub.f32 %v403, %v407
        %v410 = vmul.f32 %v408, 1.442695
        %v411 = vpow.pop %v410
        %v412 = vmul.f32 %v409, 1.442695
        %v413 = vpow.pop %v412
        %v414 = vadd.f32 %v411, %v413
        %415 = vadd.xlane.f32.xlu0 %v414
        %v416 = vpop.xlane.xlu0 %415
        %v417 = vrcp.pop %v416
        %v418 = vmul.f32 %v411, %v417
        %v419 = vmul.f32 %v413, %v417
        %s420 = sld [smem:[#allocation2]]
        %v421 = vstv %s420
        %v422 = vmul.f32 %v421, %v329
        %v423 = vmul.f32 %v421, %v330
        %v424 = vadd.f32 %v418, %v422
        %v425 = vadd.f32 %v419, %v423
        %426 = vst [vmem:[%s239] sm:$0xff] %v424
        %427 = vst [vmem:[%s239 + $0x8] sm:$0xff] %v425
        %s428 = sand.u32 %s119, 1
        %s429 = scalar_lea.sflag [#allocation5], %s428
        %s430 = sand.u32 %s119, 1
        %s431 = smul.addr %s430, 16
        %s432 = scalar_lea.vmem [#allocation8], %s431
        // Predicated region
        $region41: #{tpu_custom_call.1} parent=31 // pred_check
          %p433 = pneg %p129
        $region42: #{tpu_custom_call.1} parent=31 // pred_check_branch
          %435 = sbr.rel (%p433) target = $region44
        $region43: #{tpu_custom_call.1} parent=31 // pred_region
          %s437 = ssub.s32 256, 256
          %438 = vsyncadd %s429, %s437
          %s439 = smul.addr %s29, 2
          %s440 = smul.addr %s28, 2
          %s441 = sadd.s32 %s439, %s440
          %s442 = smul.addr %s441, 128
          %s443 = scalar_lea.hbm %s3, %s442
          %s445 = sshll.u32 %s432, 4
          %s446 = int_to_ptr.vmem [resolvable:$true] %s445
          %448 = dma.vmem_to_hbm [thread:$0]  %s446, 256, %s443, %s429
        $region44: #{tpu_custom_call.1} parent=31 // pred_fallthru
          _
      $region32: #{tpu_custom_call.1} parent=5 // pred_fallthru
        _
      %p449 = scmp.le.s32.totalorder 2, %s19
      // Predicated region
      $region45: #{tpu_custom_call.1} parent=5 // pred_check
        %p450 = pneg %p449
      $region46: #{tpu_custom_call.1} parent=5 // pred_check_branch
        %452 = sbr.rel (%p450) target = $region48
      $region47: #{tpu_custom_call.1} parent=5 // pred_region
        %s453 = ssub.s32 %s19, 2
        // Predicated region
        $region49: #{tpu_custom_call.1} parent=47 // pred_check
          %p454 = pneg %p135
        $region50: #{tpu_custom_call.1} parent=47 // pred_check_branch
          %456 = sbr.rel (%p454) target = $region52
        $region51: #{tpu_custom_call.1} parent=47 // pred_region
          %s457 = sand.u32 %s120, 1
          %s458 = scalar_lea.sflag [#allocation5], %s457
          %s459 = sand.u32 %s120, 1
          %s460 = smul.addr %s459, 16
          %s461 = scalar_lea.vmem [#allocation8], %s460
          %462 = dma.done %s458, 256
        $region52: #{tpu_custom_call.1} parent=47 // pred_fallthru
          _
      $region48: #{tpu_custom_call.1} parent=5 // pred_fallthru
        _
    $region6: #{tpu_custom_call.1} parent=1 // loop_footer
      %s23 = sadd.s32 1, %s19
    $region7: #{tpu_custom_call.1} parent=1 // loop_footer_branch
      %18 = sbr.rel target = $region3
    $region8: #{tpu_custom_call.1} parent=1 // loop_exit
      _
    %463 = vsyncpa [#allocation4], 1
    %s464 = scalar_lea.sflag [#allocation4], 1
    %465 = vsyncpa %s464, 1
    %466 = vsyncpa [#allocation7], 1
    %s467 = scalar_lea.sflag [#allocation7], 1
    %468 = vsyncpa %s467, 1
    %469 = vsyncpa [#allocation5], 1
    %s470 = scalar_lea.sflag [#allocation5], 1
    %471 = vsyncpa %s470, 1

</llo_original>
